<compile_context>
chip_gen: v7x
topology: tpu7x:2x2x1
jax: 0.10.0
libtpu: 0.0.40
codegen_flags: <defaults>
</compile_context>

<pallas_src>
from math import sqrt

import jax
import jax.numpy as jnp
from jax import lax
from jax.experimental import pallas as pl
from jax.experimental.pallas import tpu as pltpu

# TODO(synk): WhisperModel.from_pretrained(checkpoint).encoder (frozen pretrained
# transformer) has no in-script Pallas equivalent; its last_hidden_state is taken
# as the kernel input instead.


def _device_kind() -> str:
    try:
        return jax.devices()[0].device_kind.lower()
    except Exception:
        return ""


def _round_down(x: int, m: int) -> int:
    return (x // m) * m


def _gen_budgets(kind: str):
    """(input double-buffer budget, vmem_limit cap) in bytes, per TPU generation."""
    if "v7" in kind or "7x" in kind:
        # v7x: only 64 MiB physical VMEM -> keep 2x input block + scratch well under.
        return 24 << 20, 56 << 20
    if "v6" in kind:
        return 64 << 20, 100 << 20
    if "v5" in kind:
        # v5e: lower HBM BW amortizes per-step overhead at smaller blocks.
        return 48 << 20, 100 << 20
    return 24 << 20, 56 << 20  # conservative default (unknown generation)


def _choose_t_tile(B: int, T: int, D: int, itemsize: int, budget_bytes: int) -> int:
    """Largest time tile (multiple of 16 for bf16 sublane packing) whose
    double-buffered input block fits the per-generation VMEM budget."""
    if T <= 16:
        return T  # full-dim block is always legal
    granule = 16
    bytes_per_row = B * D * itemsize
    max_rows = budget_bytes // (2 * bytes_per_row)
    t_tile = int(min(1024, _round_down(max_rows, granule)))
    t_tile = max(granule, t_tile)
    # No point making the tile larger than T (rounded to the granule).
    t_tile = min(t_tile, max(granule, _round_down(T, granule)))
    return t_tile


def _entropy_head_kernel(total_t: int, t_tile: int, tiles_per_split: int, needs_mask: bool):
    inv_t = 1.0 / float(total_t)

    def kernel(h_ref, w_ref, o_ref, acc_ref):
        # h_ref  : (B, t_tile, D) tile of hidden_states
        # w_ref  : (1, D)
        # o_ref  : (1, 1, B)   per-split projected partial (written at t == last)
        # acc_ref: (B, D)      f32 running time-sum for this split
        c = pl.program_id(0)   # TensorCore split (v7x); size 1 elsewhere
        t = pl.program_id(1)   # time-tile index within the split (reduction axis)

        @pl.when(t == 0)
        def _():
            acc_ref[...] = jnp.zeros_like(acc_ref)

        h = h_ref[...].astype(jnp.float32)        # upcast once; accumulate in f32
        if needs_mask:
            # Rows past the end of T (tail tile / padded split tiles) contribute 0.
            g = c * tiles_per_split + t           # unclamped global tile index
            valid = total_t - g * t_tile
            tpos = lax.broadcasted_iota(jnp.int32, (1, t_tile, 1), 1)
            h = jnp.where(tpos < valid, h, 0.0)

        # Sum the time rows of this tile. With large tiles this is dominated by
        # cross-vreg VPU adds (the intra-vreg XLU tail is D/128 ops per step),
        # all hidden under the HBM DMA.
        acc_ref[...] += jnp.sum(h, axis=1)

        @pl.when(t == pl.num_programs(1) - 1)
        def _():
            pooled = acc_ref[...] * inv_t                    # (B, D) partial mean
            proj = jnp.sum(pooled * w_ref[...], axis=1)      # (B,)   partial @ w
            o_ref[...] = proj[None, None, :].astype(o_ref.dtype)

    return kernel


def entropy_whisper_head(hidden_states: jax.Array, w: jax.Array, *,
                         t_tile: int | None = None,
                         num_splits: int | None = None) -> jax.Array:
    """pooled = hidden_states.mean(axis=1); return pooled @ w (fused Pallas kernel)."""
    B, T, D = hidden_states.shape
    itemsize = jnp.dtype(hidden_states.dtype).itemsize
    kind = _device_kind()
    db_budget, vmem_cap = _gen_budgets(kind)

    if t_tile is None:
        t_tile = _choose_t_tile(B, T, D, itemsize, db_budget)
    assert t_tile == T or t_tile % 8 == 0, "t_tile must be a multiple of 8 (or == T)"

    n_tiles = pl.cdiv(T, t_tile)

    if num_splits is None:
        # Split the T-reduction across the two v7x TensorCores when worthwhile.
        num_splits = 2 if (("v7" in kind or "7x" in kind) and n_tiles >= 4) else 1
    tiles_per_split = pl.cdiv(n_tiles, num_splits)
    padded_tiles = num_splits * tiles_per_split
    needs_mask = (T % t_tile != 0) or (padded_tiles != n_tiles)

    if padded_tiles == n_tiles:
        h_index = lambda c, t: (0, c * tiles_per_split + t, 0)
    else:
        last = n_tiles - 1
        # Padded straggler tiles re-read the last valid tile and are fully masked.
        h_index = lambda c, t: (0, jnp.minimum(c * tiles_per_split + t, last), 0)

    w2d = w.reshape(1, D).astype(jnp.float32)

    # VMEM budget: double-buffered hidden tile + w + f32 accumulator + headroom.
    need = 2 * B * t_tile * D * itemsize + 2 * D * 4 + B * D * 4 + 4 * num_splits * B
    vmem_limit = int(min(vmem_cap, max(need + (4 << 20), 32 << 20)))

    cost = pl.CostEstimate(
        flops=B * T * D + 2 * B * D,
        transcendentals=0,
        bytes_accessed=B * T * D * itemsize + D * 4 + num_splits * B * 4,
    )

    partials = pl.pallas_call(
        _entropy_head_kernel(T, t_tile, tiles_per_split, needs_mask),
        out_shape=jax.ShapeDtypeStruct((num_splits, 1, B), jnp.float32),
        grid_spec=pltpu.PrefetchScalarGridSpec(
            num_scalar_prefetch=0,
            grid=(num_splits, tiles_per_split),
            in_specs=[
                pl.BlockSpec((B, t_tile, D), h_index),
                pl.BlockSpec((1, D), lambda c, t: (0, 0)),
            ],
            out_specs=pl.BlockSpec((1, 1, B), lambda c, t: (c, 0, 0)),
            scratch_shapes=[pltpu.VMEM((B, D), jnp.float32)],
        ),
        compiler_params=pltpu.CompilerParams(
            dimension_semantics=("parallel", "arbitrary"),
            vmem_limit_bytes=vmem_limit,
        ),
        cost_estimate=cost,
    )(hidden_states, w2d)

    # Per-split partials are already scaled by 1/T; the (num_splits, 1, B) -> (B,)
    # combine is a tiny epilogue (a squeeze when num_splits == 1).
    return jnp.sum(partials, axis=(0, 1))


if __name__ == "__main__":
    # Small whisper-flavoured shapes; T deliberately not a multiple of the tile.
    B, T, D = 2, 72, 128

    key = jax.random.PRNGKey(0)
    k_hidden, k_w = jax.random.split(key)

    # Stand-in for whisper.encoder(x).last_hidden_state (frozen pretrained model),
    # fed in bf16 (the encoder's native dtype) to halve HBM traffic.
    hidden_f32 = jax.random.normal(k_hidden, (B, T, D), dtype=jnp.float32)
    hidden_bf16 = hidden_f32.astype(jnp.bfloat16)

    # nn.init.normal_(self.w, mean=0, std=sqrt(2 / (2 * d_model)))
    w = jax.random.normal(k_w, (D,), dtype=jnp.float32) * sqrt(2.0 / (2.0 * D))

    # 1) bf16 input, auto-sized tile (production path); exercises the masked tail.
    out_bf16 = jax.block_until_ready(entropy_whisper_head(hidden_bf16, w))
    ref_bf16 = hidden_bf16.astype(jnp.float32).mean(axis=1) @ w
    assert out_bf16.shape == (B,)
    assert jnp.allclose(out_bf16, ref_bf16, atol=1e-4, rtol=1e-4), (out_bf16, ref_bf16)

    # 2) f32 input with a forced small tile: exercises the multi-step reduction
    #    and the masked tail tile (72 = 4*16 + 8).
    out_f32 = jax.block_until_ready(entropy_whisper_head(hidden_f32, w, t_tile=16))
    ref_f32 = hidden_f32.mean(axis=1) @ w
    assert jnp.allclose(out_f32, ref_f32, atol=1e-5, rtol=1e-5), (out_f32, ref_f32)

    print("KERNEL_OK")
</pallas_src>

<mosaic_0001>
module attributes {stable_mosaic.version = 11 : i64} {
  func.func @kernel(%arg0: i32, %arg1: i32, %arg2: memref<2x64x128xbf16, #tpu.memory_space<vmem>>, %arg3: memref<1x128xf32, #tpu.memory_space<vmem>>, %arg4: memref<1x1x2xf32, #tpu.memory_space<vmem>>, %arg5: memref<2x128xf32, #tpu.memory_space<vmem>>) attributes {dimension_semantics = [#tpu.dimension_semantics<parallel>, #tpu.dimension_semantics<arbitrary>], iteration_bounds = array<i64: 1, 2>, scalar_prefetch = 0 : i64, scratch_operands = 1 : i64, tpu.core_type = #tpu.core_type<tc>, window_params = [{transform_indices = @transform_0, window_bounds = array<i64: 2, 64, 128>}, {pipeline_mode = #tpu.pipeline_mode<synchronous>, transform_indices = @transform_1, window_bounds = array<i64: 1, 128>}, {transform_indices = @transform_2, window_bounds = array<i64: 1, 1, 2>}]} {
    %c0_i32 = arith.constant 0 : i32
    %0 = arith.cmpi eq, %arg1, %c0_i32 : i32
    %1 = arith.extui %0 : i1 to i32
    %c0_i32_0 = arith.constant 0 : i32
    %2 = arith.cmpi ne, %1, %c0_i32_0 : i32
    scf.if %2 {
      %cst_9 = arith.constant 0.000000e+00 : f32
      %23 = vector.broadcast %cst_9 : f32 to vector<2x128xf32>
      %c0_10 = arith.constant 0 : index
      %c0_11 = arith.constant 0 : index
      %24 = vector.load %arg5[%c0_10, %c0_11] : memref<2x128xf32, #tpu.memory_space<vmem>>, vector<2x128xf32>
      tpu.vector_store %arg5[%c0_10, %c0_11], %23 {strides = array<i32>} : memref<2x128xf32, #tpu.memory_space<vmem>>, vector<2x128xf32>,
    } else {
    }
    %c0 = arith.constant 0 : index
    %c0_1 = arith.constant 0 : index
    %c0_2 = arith.constant 0 : index
    %3 = vector.load %arg2[%c0, %c0_1, %c0_2] : memref<2x64x128xbf16, #tpu.memory_space<vmem>>, vector<2x64x128xbf16>
    %4 = arith.extf %3 : vector<2x64x128xbf16> to vector<2x64x128xf32>
    %c2_i32 = arith.constant 2 : i32
    %5 = arith.muli %arg0, %c2_i32 : i32
    %6 = arith.addi %5, %arg1 : i32
    %c64_i32 = arith.constant 64 : i32
    %7 = arith.muli %6, %c64_i32 : i32
    %c72_i32 = arith.constant 72 : i32
    %8 = arith.subi %c72_i32, %7 : i32
    %9 = tpu.iota {dimensions = array<i32: 1>} : vector<1x64x1xi32>
    %10 = vector.broadcast %8 : i32 to vector<1x64x1xi32>
    %11 = arith.cmpi slt, %9, %10 : vector<1x64x1xi32>
    %cst = arith.constant 0.000000e+00 : f32
    %12 = vector.shape_cast %11 : vector<1x64x1xi1> to vector<1x64x1xi1>
    %13 = vector.broadcast %12 : vector<1x64x1xi1> to vector<2x64x128xi1>
    %14 = vector.broadcast %cst : f32 to vector<2x64x128xf32>
    %15 = arith.select %13, %4, %14 : vector<2x64x128xi1>, vector<2x64x128xf32>
    %c0_3 = arith.constant 0 : index
    %c0_4 = arith.constant 0 : index
    %16 = vector.load %arg5[%c0_3, %c0_4] : memref<2x128xf32, #tpu.memory_space<vmem>>, vector<2x128xf32>
    %cst_5 = arith.constant dense<0.000000e+00> : vector<2x128xf32>
    %17 = vector.multi_reduction <add>, %15, %cst_5 [1] : vector<2x64x128xf32> to vector<2x128xf32>
    %18 = arith.addf %16, %17 : vector<2x128xf32>
    %c0_6 = arith.constant 0 : index
    %c0_7 = arith.constant 0 : index
    %19 = vector.load %arg5[%c0_6, %c0_7] : memref<2x128xf32, #tpu.memory_space<vmem>>, vector<2x128xf32>
    tpu.vector_store %arg5[%c0_6, %c0_7], %18 {strides = array<i32>} : memref<2x128xf32, #tpu.memory_space<vmem>>, vector<2x128xf32>,
    %c1_i32 = arith.constant 1 : i32
    %20 = arith.cmpi eq, %arg1, %c1_i32 : i32
    %21 = arith.extui %20 : i1 to i32
    %c0_i32_8 = arith.constant 0 : i32
    %22 = arith.cmpi ne, %21, %c0_i32_8 : i32
    scf.if %22 {
      %c0_9 = arith.constant 0 : index
      %c0_10 = arith.constant 0 : index
      %23 = vector.load %arg5[%c0_9, %c0_10] : memref<2x128xf32, #tpu.memory_space<vmem>>, vector<2x128xf32>
      %cst_11 = arith.constant 0.013888889 : f32
      %24 = vector.broadcast %cst_11 : f32 to vector<2x128xf32>
      %25 = arith.mulf %23, %24 : vector<2x128xf32>
      %c0_12 = arith.constant 0 : index
      %c0_13 = arith.constant 0 : index
      %26 = vector.load %arg3[%c0_12, %c0_13] : memref<1x128xf32, #tpu.memory_space<vmem>>, vector<1x128xf32>
      %27 = vector.broadcast %26 : vector<1x128xf32> to vector<2x128xf32>
      %28 = arith.mulf %25, %27 : vector<2x128xf32>
      %cst_14 = arith.constant dense<0.000000e+00> : vector<2xf32>
      %29 = vector.multi_reduction <add>, %28, %cst_14 [1] : vector<2x128xf32> to vector<2xf32>
      %30 = vector.shape_cast %29 : vector<2xf32> to vector<1x1x2xf32>
      %c0_15 = arith.constant 0 : index
      %c0_16 = arith.constant 0 : index
      %c0_17 = arith.constant 0 : index
      %31 = vector.load %arg4[%c0_15, %c0_16, %c0_17] : memref<1x1x2xf32, #tpu.memory_space<vmem>>, vector<1x1x2xf32>
      tpu.vector_store %arg4[%c0_15, %c0_16, %c0_17], %30 {strides = array<i32>} : memref<1x1x2xf32, #tpu.memory_space<vmem>>, vector<1x1x2xf32>,
    } else {
    }
    return
  }
  func.func @transform_0(%arg0: i32, %arg1: i32) -> (i32, i32, i32) {
    %c2_i32 = arith.constant 2 : i32
    %0 = arith.muli %arg0, %c2_i32 : i32
    %1 = arith.addi %0, %arg1 : i32
    %c0_i32 = arith.constant 0 : i32
    %c0_i32_0 = arith.constant 0 : i32
    %c0_i32_1 = arith.constant 0 : i32
    return %c0_i32, %1, %c0_i32_0 : i32, i32, i32
  }
  func.func @transform_1(%arg0: i32, %arg1: i32) -> (i32, i32) {
    %c0_i32 = arith.constant 0 : i32
    %c0_i32_0 = arith.constant 0 : i32
    %c0_i32_1 = arith.constant 0 : i32
    return %c0_i32, %c0_i32_0 : i32, i32
  }
  func.func @transform_2(%arg0: i32, %arg1: i32) -> (i32, i32, i32) {
    %c0_i32 = arith.constant 0 : i32
    %c0_i32_0 = arith.constant 0 : i32
    %c0_i32_1 = arith.constant 0 : i32
    return %arg0, %c0_i32, %c0_i32_0 : i32, i32, i32
  }
}

</mosaic_0001>

<llo_original>
// kernel: tpu_custom_call.1
$region0: #{tpu_custom_call.1}
  #allocation0 [shape = 'u32[]', space=smem, size = 0x4, offset = 0x4, fixed_abs, tag = 'smem constant byte address 0x4 - core index']
  #allocation1 [shape = 'u32[144,128]{1,0:T(1,128)}', space=vmem, size = 0x12000, scoped, tag = 'internal scratch']
  #allocation2 [shape = 'f32[2,128]{1,0:T(2,128)}', space=vmem, size = 0x400, scoped, tag = 'scratch operand']
  #allocation7 [shape = 's32[]', space=sflag, size = 0x4, offset = 0, fixed_abs, tag = 'sflag constant byte address 0x0 - dummy sync flag']
  %s0 = inlined_call_operand.hbm [shape: bf16[2,72,128], index: 0, kind: input, shape index: {}]
  %s1 = inlined_call_operand.vmem [shape: f32[1,128], index: 1, kind: input, shape index: {}]
  %s2 = inlined_call_operand.hbm [shape: f32[1,1,2], index: 2, kind: output, shape index: {}]
  %s3 = sld [smem:[#allocation0]]
  $region53: #{tpu_custom_call.1} parent=0
    _
  %s5 = ssub.s32 1, %s3
  %s6 = scalar_select 0, %s5, %s3
  $region1: #{tpu_custom_call.1} parent=0
    #allocation3 [shape = 'u8[65536]{0}', space=vmem, size = 0x10000, scoped, tag = 'input window, operand 0']
    #allocation4 [shape = 's32[2]{0}', space=sflag, size = 0x8, scoped, tag = 'scoped memory for tpu_custom_call.1']
    #allocation5 [shape = 's32[2]{0}', space=sflag, size = 0x8, scoped, tag = 'scoped memory for tpu_custom_call.1']
    #allocation6 [shape = 'u8[512]{0}', space=vmem, size = 0x400, scoped, tag = 'output window, operand 0, single buffered']
    %7 = vsyncpa [#allocation4], 0
    %s8 = scalar_lea.sflag [#allocation4], 1
    %9 = vsyncpa %s8, 0
    %10 = vsyncpa [#allocation5], 0
    loop: start=0, step=1, limit=4
    $region2: #{tpu_custom_call.1} parent=1 // loop_pre_header
      _
    $region3: #{tpu_custom_call.1} parent=1 // loop_header
      %s12 = sphi 0, %s16
      %p13 = scmp.ge.s32.totalorder %s12, 4
      %s19 = sphi 0, %s31
      %s20 = sphi 0, %s27
      %s21 = sphi 0, %s19
      %s22 = sphi 0, %s20
      %s23 = sphi 0, %s21
      %s24 = sphi 0, %s22
      %s38 = sphi 0, %s40
      %s41 = sphi 0, %s38
      %s42 = sphi 0, %s41
      %s58 = sphi 0, %s42
      %s62 = sphi 0, %s62
      %s64 = sphi 0, %s62
      %s65 = sphi 0, %s64
      %s79 = sphi 0, %s65
      %s85 = sphi 0, %s87
      %s88 = sphi 0, %s85
      %s89 = sphi 0, %s88
      %s105 = sphi 0, %s89
    $region4: #{tpu_custom_call.1} parent=1 // loop_header_branch
      %15 = sbr.rel (%p13) target = $region8
    $region5: #{tpu_custom_call.1} parent=1 // loop_body
      %s17 = ssub.s32 %s12, 1
      %s18 = ssub.s32 %s12, 2
      %s25 = sadd.s32 1, %s20
      %p26 = scmp.ge.s32.totalorder %s25, 2
      %s27 = scalar_select %p26, 0, %s25
      %s28 = sadd.s32 1, %s19
      %s29 = scalar_select %p26, %s28, %s19
      %p30 = scmp.ge.s32.totalorder %s29, 1
      %s31 = scalar_select %p30, 0, %s29
      %s32 = smul.u32 %s19, 2
      %s33 = sadd.s32 %s32, %s20
      %s34 = smul.u32 %s31, 2
      %s35 = sadd.s32 %s34, %s27
      %s36 = ssub.s32 %s33, %s35
      %p37 = scmp.eq.s32.totalorder %s36, 0
      %s39 = sadd.s32 %s38, 1
      %s40 = scalar_select %p37, %s38, %s39
      %p43 = pneg %p37
      %p44 = scmp.eq.s32.totalorder %s12, 1
      %p45 = por %p43, %p44
      %p46 = scmp.ne.s32.totalorder %s38, %s41
      %p47 = scmp.eq.s32.totalorder %s12, 0
      %p48 = por %p46, %p47
      %p49 = scmp.ne.s32.totalorder %s38, %s41
      %p50 = scmp.eq.s32.totalorder %s17, 1
      %p51 = por %p49, %p50
      %p52 = scmp.ne.s32.totalorder %s41, %s42
      %p53 = scmp.eq.s32.totalorder %s17, 0
      %p54 = por %p52, %p53
      %p55 = scmp.ne.s32.totalorder %s41, %s42
      %p56 = scmp.eq.s32.totalorder %s18, 1
      %p57 = por %p55, %p56
      %p59 = scmp.ne.s32.totalorder %s42, %s58
      %p60 = scmp.eq.s32.totalorder %s18, 0
      %p61 = por %p59, %p60
      %s63 = sadd.s32 %s62, 1
      %p66 = scmp.eq.s32.totalorder %s12, 1
      %p67 = scmp.ne.s32.totalorder %s62, %s64
      %p68 = scmp.eq.s32.totalorder %s12, 0
      %p69 = por %p67, %p68
      %p70 = scmp.ne.s32.totalorder %s62, %s64
      %p71 = scmp.eq.s32.totalorder %s17, 1
      %p72 = por %p70, %p71
      %p73 = scmp.ne.s32.totalorder %s64, %s65
      %p74 = scmp.eq.s32.totalorder %s17, 0
      %p75 = por %p73, %p74
      %p76 = scmp.ne.s32.totalorder %s64, %s65
      %p77 = scmp.eq.s32.totalorder %s18, 1
      %p78 = por %p76, %p77
      %p80 = scmp.ne.s32.totalorder %s65, %s79
      %p81 = scmp.eq.s32.totalorder %s18, 0
      %p82 = por %p80, %p81
      %s83 = ssub.s32 %s19, %s31
      %p84 = scmp.eq.s32.totalorder %s83, 0
      %s86 = sadd.s32 %s85, 1
      %s87 = scalar_select %p84, %s85, %s86
      %p90 = pneg %p84
      %p91 = scmp.eq.s32.totalorder %s12, 1
      %p92 = por %p90, %p91
      %p93 = scmp.ne.s32.totalorder %s85, %s88
      %p94 = scmp.eq.s32.totalorder %s12, 0
      %p95 = por %p93, %p94
      %p96 = scmp.ne.s32.totalorder %s85, %s88
      %p97 = scmp.eq.s32.totalorder %s17, 1
      %p98 = por %p96, %p97
      %p99 = scmp.ne.s32.totalorder %s88, %s89
      %p100 = scmp.eq.s32.totalorder %s17, 0
      %p101 = por %p99, %p100
      %p102 = scmp.ne.s32.totalorder %s88, %s89
      %p103 = scmp.eq.s32.totalorder %s18, 1
      %p104 = por %p102, %p103
      %p106 = scmp.ne.s32.totalorder %s89, %s105
      %p107 = scmp.eq.s32.totalorder %s18, 0
      %p108 = por %p106, %p107
      %p109 = scmp.le.s32.totalorder 1, %s12
      %p110 = scmp.lt.s32.totalorder %s12, 3
      %p111 = pnand %p109, %p110
      %p112 = pneg %p111
      // Predicated region
      $region9: #{tpu_custom_call.1} parent=5 // pred_check
        _
      $region10: #{tpu_custom_call.1} parent=5 // pred_check_branch
        %114 = sbr.rel (%p111) target = $region12
      $region11: #{tpu_custom_call.1} parent=5 // pred_region
        %s115 = ssub.s32 %s12, 1
        // Predicated region
        $region13: #{tpu_custom_call.1} parent=11 // pred_check
          %p116 = pneg %p75
        $region14: #{tpu_custom_call.1} parent=11 // pred_check_branch
          %118 = sbr.rel (%p116) target = $region16
        $region15: #{tpu_custom_call.1} parent=11 // pred_region
          _
        $region16: #{tpu_custom_call.1} parent=11 // pred_fallthru
          _
      $region12: #{tpu_custom_call.1} parent=5 // pred_fallthru
        _
      %p119 = scmp.lt.s32.totalorder %s12, 2
      // Predicated region
      $region17: #{tpu_custom_call.1} parent=5 // pred_check
        %p120 = pneg %p119
      $region18: #{tpu_custom_call.1} parent=5 // pred_check_branch
        %122 = sbr.rel (%p120) target = $region20
      $region19: #{tpu_custom_call.1} parent=5 // pred_region
        // Predicated region
        $region21: #{tpu_custom_call.1} parent=19 // pred_check
          %p123 = pneg %p48
        $region22: #{tpu_custom_call.1} parent=19 // pred_check_branch
          %125 = sbr.rel (%p123) target = $region24
        $region23: #{tpu_custom_call.1} parent=19 // pred_region
          #allocation8 [shape = 'u32[6]{0}', space=smem, size = 0x18, scoped, tag = 'DMA stride descriptor']
          %s126 = sand.u32 %s38, 1
          %s127 = scalar_lea.sflag [#allocation4], %s126
          %s128 = sand.u32 %s38, 1
          %s129 = smul.addr %s128, 64
          %s130 = scalar_lea.vmem [#allocation3], %s129
          %s131 = smul.u32 %s19, 2
          %s132 = sadd.s32 %s131, %s20
          %s133 = smul.u32 8, %s132
          %s134 = ssub.s32 9, %s133
          %p135 = scmp.lt.s32.totalorder %s134, 8
          %s136 = scalar_select %p135, %s134, 8
          %s137 = smul.u32 128, %s136
          %s139 = ssub.s32 1024, %s137
          %140 = vsyncadd %s127, %s139
          %p141 = scmp.ne.s32.totalorder 0, %s137
          %s142 = smul.addr %s133, 64
          %s143 = scalar_lea.hbm %s0, %s142
          %s144 = smul.u32 4, %s136
          %s145 = smul.u32 %s144, 2
          %s147 = sshll.u32 1, 14
          %s148 = sxor.u32 4294967295, %s147
          %s150 = sld [smem:[#allocation0]]
          %s151 = sadd.s32 2, %s150
          %s153 = sshll.u32 7, 26
          %s154 = sxor.u32 4294967295, %s153
          %s155 = sand.u32 0, %s154
          %s156 = sshll.u32 %s151, 26
          %s157 = sor.u32 %s155, %s156
          %s158 = sshll.u32 %s130, 4
          %s159 = int_to_ptr.vmem [resolvable:$true] %s158
          %s160 = sshll.u32 %s145, 4
          %165 = sst [smem:[#allocation8]] 576
          %s166 = scalar_lea.smem [#allocation8], 1
          %167 = sst [smem:[%s166]] 512
          %s168 = scalar_lea.smem [#allocation8], 2
          %169 = sst [smem:[%s168]] %s136
          %s170 = scalar_lea.smem [#allocation8], 3
          %171 = sst [smem:[%s170]] 64
          %s172 = scalar_lea.smem [#allocation8], 4
          %173 = sst [smem:[%s172]] 64
          %s174 = scalar_lea.smem [#allocation8], 5
          %175 = sst [smem:[%s174]] 4
          %177 = dma.general (%p141), %s143, %s160, %s159, %s127, [#allocation7], [#allocation8], %s157, 0
        $region24: #{tpu_custom_call.1} parent=19 // pred_fallthru
          _
      $region20: #{tpu_custom_call.1} parent=5 // pred_fallthru
        _
      %p178 = scmp.le.s32.totalorder 1, %s12
      %p179 = scmp.lt.s32.totalorder %s12, 3
      %p180 = pnand %p178, %p179
      %p181 = pneg %p180
      // Predicated region
      $region25: #{tpu_custom_call.1} parent=5 // pred_check
        _
      $region26: #{tpu_custom_call.1} parent=5 // pred_check_branch
        %183 = sbr.rel (%p180) target = $region28
      $region27: #{tpu_custom_call.1} parent=5 // pred_region
        %s184 = ssub.s32 %s12, 1
        %s185 = sand.u32 %s41, 1
        %s186 = scalar_lea.sflag [#allocation4], %s185
        %s187 = sand.u32 %s41, 1
        %s188 = smul.addr %s187, 64
        %s189 = scalar_lea.vmem [#allocation3], %s188
        // Predicated region
        $region29: #{tpu_custom_call.1} parent=27 // pred_check
          %p190 = pneg %p54
        $region30: #{tpu_custom_call.1} parent=27 // pred_check_branch
          %192 = sbr.rel (%p190) target = $region32
        $region31: #{tpu_custom_call.1} parent=27 // pred_region
          %193 = dma.done %s186, 1024
        $region32: #{tpu_custom_call.1} parent=27 // pred_fallthru
          _
        %s194 = sand.u32 %s41, 1
        %s195 = scalar_lea.sflag [#allocation4], %s194
        %s196 = sand.u32 %s41, 1
        %s197 = smul.addr %s196, 64
        %s198 = scalar_lea.vmem [#allocation3], %s197
        %p199 = pneg %p54
        %p200 = pneg %p51
        %p201 = pneg %p75
        %p202 = pneg %p72
        %p203 = pneg %p101
        %p204 = pneg %p98
        %s205 = smul.u32 %s21, 2
        %s206 = sadd.s32 %s205, %s22
        %s207 = smul.u32 8, %s206
        %s208 = ssub.s32 9, %s207
        %p209 = scmp.lt.s32.totalorder %s208, 8
        %s210 = scalar_select %p209, %s208, 8
        %s211 = smul.u32 128, %s210
        %p212 = scmp.eq.s32.totalorder %s22, 0
        // Predicated region
        $region33: #{tpu_custom_call.1} parent=27 // pred_check
          %p213 = pneg %p212
        $region34: #{tpu_custom_call.1} parent=27 // pred_check_branch
          %215 = sbr.rel (%p213) target = $region36
        $region35: #{tpu_custom_call.1} parent=27 // pred_region
          %216 = vst [vmem:[#allocation2] sm:$0x3] 0.0
        $region36: #{tpu_custom_call.1} parent=27 // pred_fallthru
          _
        %v217 = vld [vmem:[%s189] sm:$0xf]
        %v218 = vld [vmem:[%s189 + $0x4] sm:$0xf]
        %v219 = vld [vmem:[%s189 + $0x8] sm:$0xf]
        %v220 = vld [vmem:[%s189 + $0xc] sm:$0xf]
        %v221 = vld [vmem:[%s189 + $0x10] sm:$0xf]
        %v222 = vld [vmem:[%s189 + $0x14] sm:$0xf]
        %v223 = vld [vmem:[%s189 + $0x18] sm:$0xf]
        %v224 = vld [vmem:[%s189 + $0x1c] sm:$0xf]
        %v225 = vld [vmem:[%s189 + $0x20] sm:$0xf]
        %v226 = vld [vmem:[%s189 + $0x24] sm:$0xf]
        %v227 = vld [vmem:[%s189 + $0x28] sm:$0xf]
        %v228 = vld [vmem:[%s189 + $0x2c] sm:$0xf]
        %v229 = vld [vmem:[%s189 + $0x30] sm:$0xf]
        %v230 = vld [vmem:[%s189 + $0x34] sm:$0xf]
        %v231 = vld [vmem:[%s189 + $0x38] sm:$0xf]
        %v232 = vld [vmem:[%s189 + $0x3c] sm:$0xf]
        %v233 = vunpack.c.l.bf16 %v217
        %v234 = vunpack.c.l.bf16 %v218
        %v235 = vunpack.c.l.bf16 %v219
        %v236 = vunpack.c.l.bf16 %v220
        %v237 = vunpack.c.l.bf16 %v221
        %v238 = vunpack.c.l.bf16 %v222
        %v239 = vunpack.c.l.bf16 %v223
        %v240 = vunpack.c.l.bf16 %v224
        %v241 = vunpack.c.l.bf16 %v225
        %v242 = vunpack.c.l.bf16 %v226
        %v243 = vunpack.c.l.bf16 %v227
        %v244 = vunpack.c.l.bf16 %v228
        %v245 = vunpack.c.l.bf16 %v229
        %v246 = vunpack.c.l.bf16 %v230
        %v247 = vunpack.c.l.bf16 %v231
        %v248 = vunpack.c.l.bf16 %v232
        %s249 = smul.u32 %s21, 2
        %s250 = sadd.s32 %s249, %s22
        %s251 = smul.u32 %s250, 64
        %s252 = ssub.s32 72, %s251
        %v253 = vlaneseq
        %v254 = vshrl.u32 %v253, 7
        %v255 = vadd.s32 %v254, 8
        %v256 = vadd.s32 %v254, 16
        %v257 = vadd.s32 %v254, 24
        %v258 = vadd.s32 %v254, 32
        %v259 = vadd.s32 %v254, 40
        %v260 = vadd.s32 %v254, 48
        %v261 = vadd.s32 %v254, 56
        %v262 = vstv %s252
        %vm263 = vcmp.lt.s32.totalorder %v254, %v262
        %vm264 = vcmp.lt.s32.totalorder %v255, %v262
        %vm265 = vcmp.lt.s32.totalorder %v256, %v262
        %vm266 = vcmp.lt.s32.totalorder %v257, %v262
        %vm267 = vcmp.lt.s32.totalorder %v258, %v262
        %vm268 = vcmp.lt.s32.totalorder %v259, %v262
        %vm269 = vcmp.lt.s32.totalorder %v260, %v262
        %vm270 = vcmp.lt.s32.totalorder %v261, %v262
        %v271 = vsel %vm263, 1, 0
        %v272 = vsel %vm264, 1, 0
        %v273 = vsel %vm265, 1, 0
        %v274 = vsel %vm266, 1, 0
        %v275 = vsel %vm267, 1, 0
        %v276 = vsel %vm268, 1, 0
        %v277 = vsel %vm269, 1, 0
        %v278 = vsel %vm270, 1, 0
        %vm279 = vcmp.eq.s32.totalorder %v271, 1
        %vm280 = vcmp.eq.s32.totalorder %v272, 1
        %vm281 = vcmp.eq.s32.totalorder %v273, 1
        %vm282 = vcmp.eq.s32.totalorder %v274, 1
        %vm283 = vcmp.eq.s32.totalorder %v275, 1
        %vm284 = vcmp.eq.s32.totalorder %v276, 1
        %vm285 = vcmp.eq.s32.totalorder %v277, 1
        %vm286 = vcmp.eq.s32.totalorder %v278, 1
        %v287 = vsel %vm279, %v233, 0.0
        %v288 = vsel %vm280, %v234, 0.0
        %v289 = vsel %vm281, %v235, 0.0
        %v290 = vsel %vm282, %v236, 0.0
        %v291 = vsel %vm283, %v237, 0.0
        %v292 = vsel %vm284, %v238, 0.0
        %v293 = vsel %vm285, %v239, 0.0
        %v294 = vsel %vm286, %v240, 0.0
        %v295 = vsel %vm279, %v241, 0.0
        %v296 = vsel %vm280, %v242, 0.0
        %v297 = vsel %vm281, %v243, 0.0
        %v298 = vsel %vm282, %v244, 0.0
        %v299 = vsel %vm283, %v245, 0.0
        %v300 = vsel %vm284, %v246, 0.0
        %v301 = vsel %vm285, %v247, 0.0
        %v302 = vsel %vm286, %v248, 0.0
        %v303 = vld [vmem:[#allocation2] sm:$0x3]
        %v304 = vadd.f32 %v287, %v288
        %v305 = vadd.f32 %v304, %v289
        %v306 = vadd.f32 %v305, %v290
        %v307 = vadd.f32 %v306, %v291
        %v308 = vadd.f32 %v307, %v292
        %v309 = vadd.f32 %v308, %v293
        %v310 = vadd.f32 %v309, %v294
        %v311 = vrot.slane %v310, 4
        %v312 = vadd.f32 %v310, %v311
        %v313 = vrot.slane %v312, 2
        %v314 = vadd.f32 %v312, %v313
        %v315 = vrot.slane %v314, 1
        %v316 = vadd.f32 %v314, %v315
        %v317 = vadd.f32 %v295, %v296
        %v318 = vadd.f32 %v317, %v297
        %v319 = vadd.f32 %v318, %v298
        %v320 = vadd.f32 %v319, %v299
        %v321 = vadd.f32 %v320, %v300
        %v322 = vadd.f32 %v321, %v301
        %v323 = vadd.f32 %v322, %v302
        %v324 = vrot.slane %v323, 4
        %v325 = vadd.f32 %v323, %v324
        %v326 = vrot.slane %v325, 2
        %v327 = vadd.f32 %v325, %v326
        %v328 = vrot.slane %v327, 1
        %v329 = vadd.f32 %v327, %v328
        %vm332 = vcmask 1041409
        %v333 = vsel %vm332, %v329, %v316
        %v335 = vadd.f32 %v303, %v333
        %336 = vst [vmem:[#allocation2] sm:$0x3] %v335
        %p337 = scmp.eq.s32.totalorder %s22, 1
        // Predicated region
        $region37: #{tpu_custom_call.1} parent=27 // pred_check
          %p338 = pneg %p337
        $region38: #{tpu_custom_call.1} parent=27 // pred_check_branch
          %340 = sbr.rel (%p338) target = $region40
        $region39: #{tpu_custom_call.1} parent=27 // pred_region
          %v341 = vld [vmem:[#allocation2] sm:$0x3]
          %v342 = vmul.f32 %v341, 0.013888889
          %v343 = vld [vmem:[%s1] sm:$0x1]
          %v345 = vlaneseq
          %v346 = vshrl.u32 %v345, 7
          %v347 = vsub.s32 0, %v346
          %v348 = vrot.slane %v343, %v347
          %v350 = vmul.f32 %v342, %v348
          %vm351 = vcmask 1041408
          %v352 = vsel %vm351, %v350, 0.0
          %353 = vadd.xlane.f32.xlu0 %v352
          %v354 = vpop.xlane.xlu0 %353
          %v356 = vlaneseq
          %v357 = vand.u32 %v356, 127
          %v358 = vlaneseq
          %v359 = vshrl.u32 %v358, 7
          %v360 = vsub.s32 %v357, %v359
          %v361 = vrot.slane %v354, %v360
          %vm363 = vcmask 8192
          %364 = vst.msk [vmem:[#allocation6] sm:$0x1] %vm363, %v361
        $region40: #{tpu_custom_call.1} parent=27 // pred_fallthru
          _
        // Predicated region
        $region41: #{tpu_custom_call.1} parent=27 // pred_check
          %p365 = pneg %p98
        $region42: #{tpu_custom_call.1} parent=27 // pred_check_branch
          %367 = sbr.rel (%p365) target = $region44
        $region43: #{tpu_custom_call.1} parent=27 // pred_region
          %s369 = ssub.s32 16, 16
          %370 = vsyncadd [#allocation5], %s369
          %s371 = smul.addr %s21, 16
          %s372 = scalar_lea.hbm %s2, %s371
          %s374 = sshll.u32 [#allocation6], 4
          %s375 = int_to_ptr.vmem [resolvable:$true] %s374
          %377 = dma.vmem_to_hbm [thread:$0]  %s375, 16, %s372, [#allocation5]
        $region44: #{tpu_custom_call.1} parent=27 // pred_fallthru
          _
        // Predicated region
        $region45: #{tpu_custom_call.1} parent=27 // pred_check
          %p378 = pneg %p98
        $region46: #{tpu_custom_call.1} parent=27 // pred_check_branch
          %380 = sbr.rel (%p378) target = $region48
        $region47: #{tpu_custom_call.1} parent=27 // pred_region
          %381 = dma.done [#allocation5], 16
        $region48: #{tpu_custom_call.1} parent=27 // pred_fallthru
          _
      $region28: #{tpu_custom_call.1} parent=5 // pred_fallthru
        _
      %p382 = scmp.le.s32.totalorder 2, %s12
      // Predicated region
      $region49: #{tpu_custom_call.1} parent=5 // pred_check
        %p383 = pneg %p382
      $region50: #{tpu_custom_call.1} parent=5 // pred_check_branch
        %385 = sbr.rel (%p383) target = $region52
      $region51: #{tpu_custom_call.1} parent=5 // pred_region
        %s386 = ssub.s32 %s12, 2
      $region52: #{tpu_custom_call.1} parent=5 // pred_fallthru
        _
    $region6: #{tpu_custom_call.1} parent=1 // loop_footer
      %s16 = sadd.s32 1, %s12
    $region7: #{tpu_custom_call.1} parent=1 // loop_footer_branch
      %11 = sbr.rel target = $region3
    $region8: #{tpu_custom_call.1} parent=1 // loop_exit
      _
    %387 = vsyncpa [#allocation4], 1
    %s388 = scalar_lea.sflag [#allocation4], 1
    %389 = vsyncpa %s388, 1
    %390 = vsyncpa [#allocation5], 1
    %s391 = scalar_lea.sflag [#allocation5], 1
    %392 = vsyncpa %s391, 1

</llo_original>
